<compile_context>
chip_gen: v7x
topology: tpu7x:2x2x1
jax: 0.10.0
libtpu: 0.0.40
codegen_flags: <defaults>
</compile_context>

<pallas_src>
import functools

import jax
import jax.numpy as jnp
from jax.experimental import pallas as pl
from jax.experimental.pallas import tpu as pltpu

BN_EPS = 1e-5
TILE_A_MAX = 512                    # rows per M tile, matmul+stats pass
TILE_B_MAX = 1024                   # rows per M tile, finalize (mem-bound) pass
VMEM_LIMIT_BYTES = 48 * 1024 * 1024  # > 16/32 MiB scoped defaults, < v7x 64 MiB


def _round_up(x, m):
    return ((x + m - 1) // m) * m


def _cdiv(a, b):
    return (a + b - 1) // b


def _mxu_align(dim):
    # 256-wide alignment for wide operands (v6e/v7x 2x256^2 MXUs), 128 for
    # narrow ones (matches v5e's 4x128^2 and avoids padding waste).
    return 256 if dim >= 256 else 128


def _pad2(a, rows, cols):
    r, c = a.shape
    return jnp.pad(a, ((0, rows - r), (0, cols - c)))


def _pick_tiles(m):
    """(tile_a, tile_b, m_pad): tile_a minimizes padding waste (<=TILE_A_MAX),
    tile_b is the largest multiple of tile_a <= TILE_B_MAX dividing m_pad."""
    na = _cdiv(m, TILE_A_MAX)
    tile_a = _round_up(_cdiv(m, na), 8)
    m_pad = _round_up(m, tile_a)
    n_tiles = m_pad // tile_a
    tile_b = tile_a
    for f in range(min(n_tiles, TILE_B_MAX // tile_a), 0, -1):
        if n_tiles % f == 0:
            tile_b = tile_a * f
            break
    return tile_a, tile_b, m_pad


# ---------------------------------------------------------------------------
# Kernel A: conv-as-matmul + per-tile BN partial statistics ("parallel" grid)
#   inputs : patches (TM, K)  weights (K, C)   [+ shortcut patches/weights]
#   outputs: y_raw (TM, C) per tile (matmul_dtype);
#            per-tile sum / sumsq written as an (8, C) block (row-broadcast)
# ---------------------------------------------------------------------------
def _conv_stats_kernel(*refs, fuse_shortcut: bool):
    if fuse_shortcut:
        (p_ref, w_ref, sp_ref, sw_ref,
         y_ref, sc_ref, ysum_ref, ysq_ref, ssum_ref, ssq_ref) = refs
    else:
        p_ref, w_ref, y_ref, ysum_ref, ysq_ref = refs

    def mm_and_stats(a_ref, b_ref, out_ref, sum_ref, sq_ref):
        # MXU matmul, f32 accumulate (operands may be bf16).  No conv bias:
        # it is cancelled by the training-mode BN mean subtraction.
        y = jnp.dot(a_ref[...], b_ref[...], preferred_element_type=jnp.float32)
        out_ref[...] = y.astype(out_ref.dtype)
        c = y.shape[1]
        sum_ref[...] = jnp.broadcast_to(jnp.sum(y, axis=0, keepdims=True), (8, c))
        sq_ref[...] = jnp.broadcast_to(jnp.sum(y * y, axis=0, keepdims=True), (8, c))

    mm_and_stats(p_ref, w_ref, y_ref, ysum_ref, ysq_ref)
    if fuse_shortcut:
        mm_and_stats(sp_ref, sw_ref, sc_ref, ssum_ref, ssq_ref)


def _conv_stats(patches, w, s_patches=None, s_w=None, *, tile_m, store_dtype):
    m_pad, k = patches.shape
    c = w.shape[1]
    fuse = s_patches is not None
    n_tiles = m_pad // tile_m

    row_in = pl.BlockSpec((tile_m, k), lambda i: (i, 0))
    w_spec = pl.BlockSpec((k, c), lambda i: (0, 0))
    row_out = pl.BlockSpec((tile_m, c), lambda i: (i, 0))
    stat_out = pl.BlockSpec((8, c), lambda i: (i, 0))

    args = [patches, w]
    in_specs = [row_in, w_spec]
    out_shapes = [jax.ShapeDtypeStruct((m_pad, c), store_dtype)]
    out_specs = [row_out]
    if fuse:
        ksc = s_patches.shape[1]
        args += [s_patches, s_w]
        in_specs += [pl.BlockSpec((tile_m, ksc), lambda i: (i, 0)),
                     pl.BlockSpec((ksc, c), lambda i: (0, 0))]
        out_shapes.append(jax.ShapeDtypeStruct((m_pad, c), store_dtype))
        out_specs.append(row_out)
    out_shapes += [jax.ShapeDtypeStruct((8 * n_tiles, c), jnp.float32)] * 2
    out_specs += [stat_out, stat_out]
    if fuse:
        out_shapes += [jax.ShapeDtypeStruct((8 * n_tiles, c), jnp.float32)] * 2
        out_specs += [stat_out, stat_out]

    kernel = functools.partial(_conv_stats_kernel, fuse_shortcut=fuse)
    return pl.pallas_call(
        kernel,
        out_shape=tuple(out_shapes),
        grid=(n_tiles,),
        in_specs=in_specs,
        out_specs=tuple(out_specs),
        compiler_params=pltpu.CompilerParams(
            dimension_semantics=("parallel",),          # megacore-shardable
            vmem_limit_bytes=VMEM_LIMIT_BYTES),
    )(*args)


# ---------------------------------------------------------------------------
# Kernel B: y*scale + shift [+ shortcut*s_scale + s_shift | + identity] + ReLU
# All math f32 on the VPU (v5e safe); inputs may be bf16 and are upcast here.
# ---------------------------------------------------------------------------
def _finalize_kernel(*refs, relu: bool, mode: str):
    if mode == "proj":
        y_ref, sca_ref, shf_ref, sc_ref, ssca_ref, sshf_ref, o_ref = refs
    elif mode == "ident":
        y_ref, sca_ref, shf_ref, sc_ref, o_ref = refs
    else:  # "plain"
        y_ref, sca_ref, shf_ref, o_ref = refs

    out = y_ref[...].astype(jnp.float32) * sca_ref[...] + shf_ref[...]
    if mode == "proj":
        out = out + (sc_ref[...].astype(jnp.float32) * ssca_ref[...] + sshf_ref[...])
    elif mode == "ident":
        out = out + sc_ref[...].astype(jnp.float32)
    if relu:
        out = jnp.maximum(out, 0.0)
    o_ref[...] = out.astype(o_ref.dtype)


def _finalize(y_raw, scale, shift, shortcut=None, s_scale=None, s_shift=None,
              *, relu, tile_m, out_dtype):
    m_pad, c = y_raw.shape
    if shortcut is None:
        mode = "plain"
    elif s_scale is None:
        mode = "ident"
    else:
        mode = "proj"

    row_spec = pl.BlockSpec((tile_m, c), lambda i: (i, 0))
    vec_spec = pl.BlockSpec((1, c), lambda i: (0, 0))

    args = [y_raw, scale, shift]
    in_specs = [row_spec, vec_spec, vec_spec]
    if mode == "proj":
        args += [shortcut, s_scale, s_shift]
        in_specs += [row_spec, vec_spec, vec_spec]
    elif mode == "ident":
        args += [shortcut]
        in_specs += [row_spec]

    kernel = functools.partial(_finalize_kernel, relu=relu, mode=mode)
    return pl.pallas_call(
        kernel,
        out_shape=jax.ShapeDtypeStruct((m_pad, c), out_dtype),
        grid=(m_pad // tile_m,),
        in_specs=in_specs,
        out_specs=row_spec,
        compiler_params=pltpu.CompilerParams(
            dimension_semantics=("parallel",),
            vmem_limit_bytes=VMEM_LIMIT_BYTES),
    )(*args)


# ---------------------------------------------------------------------------
# Plain-JAX glue: im2col, weight flattening, BN scale/shift folding
# ---------------------------------------------------------------------------
def _extract_patches_3x3(x_nhwc, stride):
    n, h, w, c = x_nhwc.shape
    h_out = (h + 2 - 3) // stride + 1
    w_out = (w + 2 - 3) // stride + 1
    xp = jnp.pad(x_nhwc, ((0, 0), (1, 1), (1, 1), (0, 0)))
    cols = []
    for kh in range(3):
        for kw in range(3):
            sl = jax.lax.slice(
                xp,
                (0, kh, kw, 0),
                (n, kh + stride * (h_out - 1) + 1, kw + stride * (w_out - 1) + 1, c),
                (1, stride, stride, 1))
            cols.append(sl)
    patches = jnp.stack(cols, axis=3)                  # (N, Ho, Wo, 9, C)
    return patches.reshape(n * h_out * w_out, 9 * c), h_out, w_out


def _flatten_w3x3(w_oihw):   # (Cout, Cin, 3, 3) -> (9*Cin, Cout), matches patch order
    return jnp.transpose(w_oihw, (2, 3, 1, 0)).reshape(
        9 * w_oihw.shape[1], w_oihw.shape[0])


def _bn_scale_shift(sum_p, sq_p, m_true, gamma, beta, c_out, c_pad):
    # Partials come as 8 identical rows per tile -> take every 8th row.
    ysum = jnp.sum(sum_p[::8], axis=0)[:c_out]
    ysq = jnp.sum(sq_p[::8], axis=0)[:c_out]
    mean = ysum / m_true
    # TODO(synk): single-pass E[y^2]-E[y]^2 can cancel when |mean| >> std;
    # switch to mean-shifted per-tile partials if that regime shows up.
    var = jnp.maximum(ysq / m_true - mean * mean, 0.0)
    scale = gamma * jax.lax.rsqrt(var + BN_EPS)
    shift = beta - mean * scale
    pad = (0, c_pad - c_out)
    return (jnp.pad(scale, pad).reshape(1, c_pad),
            jnp.pad(shift, pad).reshape(1, c_pad))


# ---------------------------------------------------------------------------
# Res_block forward (Pallas-backed)
# ---------------------------------------------------------------------------
def res_block_forward(x_nchw, p, ch_in, ch_out, stride1, stride2,
                      matmul_dtype=jnp.bfloat16):
    # NCHW -> NHWC, cast to matmul_dtype BEFORE im2col so the 9x patch tensor
    # is materialized narrow (biggest single HBM buffer in the pipeline).
    x = jnp.transpose(x_nchw, (0, 2, 3, 1)).astype(matmul_dtype)
    n, h, w, _ = x.shape
    c_pad = _round_up(ch_out, _mxu_align(ch_out))

    # ---- blk[0..2]: conv3x3(stride1, pad1) + BN + ReLU ----
    patches1, h1, w1 = _extract_patches_3x3(x, stride1)
    m1 = n * h1 * w1
    tile_a1, tile_b1, m1_pad = _pick_tiles(m1)
    k1 = 9 * ch_in
    k1_pad = _round_up(k1, _mxu_align(k1))
    p1 = _pad2(patches1, m1_pad, k1_pad)
    w1f = _pad2(_flatten_w3x3(p['w1']).astype(matmul_dtype), k1_pad, c_pad)

    y1_raw, y1sum, y1sq = _conv_stats(p1, w1f, tile_m=tile_a1,
                                      store_dtype=matmul_dtype)
    s1, t1 = _bn_scale_shift(y1sum, y1sq, m1, p['g1'], p['be1'], ch_out, c_pad)
    # y1 written in matmul_dtype so conv2's patch tensor is built narrow too.
    y1 = _finalize(y1_raw, s1, t1, relu=True, tile_m=tile_b1,
                   out_dtype=matmul_dtype)
    y1 = y1[:m1, :ch_out].reshape(n, h1, w1, ch_out)

    # ---- blk[3..4]: conv3x3(stride2, pad1) + BN, + shortcut, ReLU ----
    patches2, h2, w2 = _extract_patches_3x3(y1, stride2)
    m2 = n * h2 * w2
    tile_a2, tile_b2, m2_pad = _pick_tiles(m2)
    k2 = 9 * ch_out
    k2_pad = _round_up(k2, _mxu_align(k2))
    p2 = _pad2(patches2, m2_pad, k2_pad)
    w2f = _pad2(_flatten_w3x3(p['w2']).astype(matmul_dtype), k2_pad, c_pad)

    if ch_in != ch_out:
        # Projection shortcut: 1x1 conv stride 2 pad 0 == spatial subsampling,
        # fused into the conv2 matmul/stats call (one launch, shared M tiles).
        xs = x[:, ::2, ::2, :]
        hs, ws = xs.shape[1], xs.shape[2]
        assert (hs, ws) == (h2, w2), "shortcut / main-branch spatial mismatch"
        ksc_pad = _round_up(ch_in, _mxu_align(ch_in))
        sp = _pad2(xs.reshape(n * hs * ws, ch_in), m2_pad, ksc_pad)
        swf = _pad2(p['wsc'][:, :, 0, 0].T.astype(matmul_dtype), ksc_pad, c_pad)

        y2_raw, sc_raw, y2sum, y2sq, scsum, scsq = _conv_stats(
            p2, w2f, sp, swf, tile_m=tile_a2, store_dtype=matmul_dtype)
        s2, t2 = _bn_scale_shift(y2sum, y2sq, m2, p['g2'], p['be2'], ch_out, c_pad)
        ss, ts = _bn_scale_shift(scsum, scsq, m2, p['gsc'], p['besc'], ch_out, c_pad)
        out = _finalize(y2_raw, s2, t2, shortcut=sc_raw, s_scale=ss, s_shift=ts,
                        relu=True, tile_m=tile_b2, out_dtype=jnp.float32)
    else:
        # Identity shortcut fast path: plain add, shortcut streamed in
        # matmul_dtype (valid only for stride1 == stride2 == 1).
        assert stride1 == 1 and stride2 == 1 and (h2, w2) == (h, w), \
            "identity shortcut requires matching spatial dims"
        y2_raw, y2sum, y2sq = _conv_stats(p2, w2f, tile_m=tile_a2,
                                          store_dtype=matmul_dtype)
        s2, t2 = _bn_scale_shift(y2sum, y2sq, m2, p['g2'], p['be2'], ch_out, c_pad)
        ident = _pad2(x.reshape(n * h * w, ch_out), m2_pad, c_pad)
        out = _finalize(y2_raw, s2, t2, shortcut=ident,
                        relu=True, tile_m=tile_b2, out_dtype=jnp.float32)

    out = out[:m2, :ch_out].reshape(n, h2, w2, ch_out)
    return jnp.transpose(out, (0, 3, 1, 2))            # NHWC -> NCHW


# ---------------------------------------------------------------------------
# Pure-JAX reference (keeps the conv bias; must still match, since a bias
# before training-mode BN is cancelled by the mean subtraction)
# ---------------------------------------------------------------------------
def ref_forward(x, p, ch_in, ch_out, stride1, stride2):
    hp = jax.lax.Precision.HIGHEST

    def conv(xx, w, b, stride, pad):
        y = jax.lax.conv_general_dilated(
            xx, w, (stride, stride), [(pad, pad), (pad, pad)],
            dimension_numbers=('NCHW', 'OIHW', 'NCHW'), precision=hp)
        return y + b[None, :, None, None]

    def bn(y, g, be):
        mean = jnp.mean(y, axis=(0, 2, 3), keepdims=True)
        var = jnp.mean((y - mean) ** 2, axis=(0, 2, 3), keepdims=True)
        return ((y - mean) / jnp.sqrt(var + BN_EPS)
                * g[None, :, None, None] + be[None, :, None, None])

    out = jnp.maximum(bn(conv(x, p['w1'], p['b1'], stride1, 1), p['g1'], p['be1']), 0.0)
    out = bn(conv(out, p['w2'], p['b2'], stride2, 1), p['g2'], p['be2'])
    if ch_in != ch_out:
        sc = bn(conv(x, p['wsc'], p['bsc'], 2, 0), p['gsc'], p['besc'])
    else:
        sc = x
    return jnp.maximum(out + sc, 0.0)


def init_params(key, ch_in, ch_out):
    ks = jax.random.split(key, 12)
    p = {
        'w1': 0.1 * jax.random.normal(ks[0], (ch_out, ch_in, 3, 3), jnp.float32),
        'b1': 0.1 * jax.random.normal(ks[1], (ch_out,), jnp.float32),
        'g1': 1.0 + 0.1 * jax.random.normal(ks[2], (ch_out,), jnp.float32),
        'be1': 0.1 * jax.random.normal(ks[3], (ch_out,), jnp.float32),
        'w2': 0.1 * jax.random.normal(ks[4], (ch_out, ch_out, 3, 3), jnp.float32),
        'b2': 0.1 * jax.random.normal(ks[5], (ch_out,), jnp.float32),
        'g2': 1.0 + 0.1 * jax.random.normal(ks[6], (ch_out,), jnp.float32),
        'be2': 0.1 * jax.random.normal(ks[7], (ch_out,), jnp.float32),
    }
    if ch_in != ch_out:
        p.update({
            'wsc': 0.1 * jax.random.normal(ks[8], (ch_out, ch_in, 1, 1), jnp.float32),
            'bsc': 0.1 * jax.random.normal(ks[9], (ch_out,), jnp.float32),
            'gsc': 1.0 + 0.1 * jax.random.normal(ks[10], (ch_out,), jnp.float32),
            'besc': 0.1 * jax.random.normal(ks[11], (ch_out,), jnp.float32),
        })
    return p


if __name__ == "__main__":
    key = jax.random.PRNGKey(0)
    kx, kp = jax.random.split(key)

    # Case 1: projection shortcut (ch_in != ch_out), downsampling block.
    x = jax.random.normal(kx, (2, 4, 16, 16), jnp.float32)
    params = init_params(kp, 4, 8)
    ref = ref_forward(x, params, 4, 8, 2, 1)

    out_f32 = jax.block_until_ready(
        res_block_forward(x, params, 4, 8, 2, 1, matmul_dtype=jnp.float32))
    assert out_f32.shape == (2, 8, 8, 8)
    assert bool(jnp.allclose(out_f32, ref, atol=2e-3, rtol=2e-3)), \
        "projection f32 mismatch"

    # bf16 fast path: bf16 patches, bf16 intermediates, f32 stats/finalize.
    out_bf16 = jax.block_until_ready(
        res_block_forward(x, params, 4, 8, 2, 1, matmul_dtype=jnp.bfloat16))
    assert float(jnp.max(jnp.abs(out_bf16 - ref))) < 0.3, "projection bf16 mismatch"

    # Case 2: identity shortcut (ch_in == ch_out, strides 1).
    params_id = init_params(kp, 4, 4)
    ref_id = ref_forward(x, params_id, 4, 4, 1, 1)
    out_id = jax.block_until_ready(
        res_block_forward(x, params_id, 4, 4, 1, 1, matmul_dtype=jnp.float32))
    assert out_id.shape == (2, 4, 16, 16)
    assert bool(jnp.allclose(out_id, ref_id, atol=2e-3, rtol=2e-3)), \
        "identity f32 mismatch"

    print("KERNEL_OK")
</pallas_src>

<mosaic_0001>
module attributes {stable_mosaic.version = 11 : i64} {
  func.func @_conv_stats_kernel(%arg0: i32, %arg1: memref<128x128xf32, #tpu.memory_space<vmem>>, %arg2: memref<128x128xf32, #tpu.memory_space<vmem>>, %arg3: memref<128x128xf32, #tpu.memory_space<vmem>>, %arg4: memref<8x128xf32, #tpu.memory_space<vmem>>, %arg5: memref<8x128xf32, #tpu.memory_space<vmem>>) attributes {dimension_semantics = [#tpu.dimension_semantics<parallel>], iteration_bounds = array<i64: 1>, scalar_prefetch = 0 : i64, scratch_operands = 0 : i64, tpu.core_type = #tpu.core_type<tc>, window_params = [{transform_indices = @transform_0, window_bounds = array<i64: 128, 128>}, {pipeline_mode = #tpu.pipeline_mode<synchronous>, transform_indices = @transform_1, window_bounds = array<i64: 128, 128>}, {transform_indices = @transform_2, window_bounds = array<i64: 128, 128>}, {transform_indices = @transform_3, window_bounds = array<i64: 8, 128>}, {transform_indices = @transform_4, window_bounds = array<i64: 8, 128>}]} {
    %c0 = arith.constant 0 : index
    %c0_0 = arith.constant 0 : index
    %0 = vector.load %arg1[%c0, %c0_0] : memref<128x128xf32, #tpu.memory_space<vmem>>, vector<128x128xf32>
    %c0_1 = arith.constant 0 : index
    %c0_2 = arith.constant 0 : index
    %1 = vector.load %arg2[%c0_1, %c0_2] : memref<128x128xf32, #tpu.memory_space<vmem>>, vector<128x128xf32>
    %cst = arith.constant dense<0.000000e+00> : vector<128x128xf32>
    %2 = tpu.matmul %0, %1, %cst {dimension_numbers = #tpu.dot_dimension_numbers<[1], [0], [0], [1], [0, 0, 1, 1], [], []>} : vector<128x128xf32>, vector<128x128xf32>, vector<128x128xf32> -> vector<128x128xf32>
    %c0_3 = arith.constant 0 : index
    %c0_4 = arith.constant 0 : index
    %3 = vector.load %arg3[%c0_3, %c0_4] : memref<128x128xf32, #tpu.memory_space<vmem>>, vector<128x128xf32>
    tpu.vector_store %arg3[%c0_3, %c0_4], %2 {strides = array<i32>} : memref<128x128xf32, #tpu.memory_space<vmem>>, vector<128x128xf32>,
    %cst_5 = arith.constant dense<0.000000e+00> : vector<128xf32>
    %4 = vector.multi_reduction <add>, %2, %cst_5 [0] : vector<128x128xf32> to vector<128xf32>
    %5 = vector.shape_cast %4 : vector<128xf32> to vector<1x128xf32>
    %6 = vector.shape_cast %5 : vector<1x128xf32> to vector<1x128xf32>
    %7 = vector.broadcast %6 : vector<1x128xf32> to vector<8x128xf32>
    %c0_6 = arith.constant 0 : index
    %c0_7 = arith.constant 0 : index
    %8 = vector.load %arg4[%c0_6, %c0_7] : memref<8x128xf32, #tpu.memory_space<vmem>>, vector<8x128xf32>
    tpu.vector_store %arg4[%c0_6, %c0_7], %7 {strides = array<i32>} : memref<8x128xf32, #tpu.memory_space<vmem>>, vector<8x128xf32>,
    %9 = arith.mulf %2, %2 : vector<128x128xf32>
    %cst_8 = arith.constant dense<0.000000e+00> : vector<128xf32>
    %10 = vector.multi_reduction <add>, %9, %cst_8 [0] : vector<128x128xf32> to vector<128xf32>
    %11 = vector.shape_cast %10 : vector<128xf32> to vector<1x128xf32>
    %12 = vector.shape_cast %11 : vector<1x128xf32> to vector<1x128xf32>
    %13 = vector.broadcast %12 : vector<1x128xf32> to vector<8x128xf32>
    %c0_9 = arith.constant 0 : index
    %c0_10 = arith.constant 0 : index
    %14 = vector.load %arg5[%c0_9, %c0_10] : memref<8x128xf32, #tpu.memory_space<vmem>>, vector<8x128xf32>
    tpu.vector_store %arg5[%c0_9, %c0_10], %13 {strides = array<i32>} : memref<8x128xf32, #tpu.memory_space<vmem>>, vector<8x128xf32>,
    return
  }
  func.func @transform_0(%arg0: i32) -> (i32, i32) {
    %c0_i32 = arith.constant 0 : i32
    %c0_i32_0 = arith.constant 0 : i32
    return %arg0, %c0_i32 : i32, i32
  }
  func.func @transform_1(%arg0: i32) -> (i32, i32) {
    %c0_i32 = arith.constant 0 : i32
    %c0_i32_0 = arith.constant 0 : i32
    %c0_i32_1 = arith.constant 0 : i32
    return %c0_i32, %c0_i32_0 : i32, i32
  }
  func.func @transform_2(%arg0: i32) -> (i32, i32) {
    %c0_i32 = arith.constant 0 : i32
    %c0_i32_0 = arith.constant 0 : i32
    return %arg0, %c0_i32 : i32, i32
  }
  func.func @transform_3(%arg0: i32) -> (i32, i32) {
    %c0_i32 = arith.constant 0 : i32
    %c0_i32_0 = arith.constant 0 : i32
    return %arg0, %c0_i32 : i32, i32
  }
  func.func @transform_4(%arg0: i32) -> (i32, i32) {
    %c0_i32 = arith.constant 0 : i32
    %c0_i32_0 = arith.constant 0 : i32
    return %arg0, %c0_i32 : i32, i32
  }
}

</mosaic_0001>

<llo_original>
// kernel: tpu_custom_call.1
$region0: #{tpu_custom_call.1}
  #allocation0 [shape = 'u32[]', space=smem, size = 0x4, offset = 0x4, fixed_abs, tag = 'smem constant byte address 0x4 - core index']
  #allocation1 [shape = 'u32[144,128]{1,0:T(1,128)}', space=vmem, size = 0x12000, scoped, tag = 'internal scratch']
  %s0 = inlined_call_operand.hbm [shape: f32[128,128], index: 0, kind: input, shape index: {}]
  %s1 = inlined_call_operand.hbm [shape: f32[128,128], index: 1, kind: input, shape index: {}]
  %s2 = inlined_call_operand.hbm [shape: f32[128,128], index: 2, kind: output, shape index: {0}]
  %s3 = inlined_call_operand.hbm [shape: f32[8,128], index: 3, kind: output, shape index: {1}]
  %s4 = inlined_call_operand.hbm [shape: f32[8,128], index: 4, kind: output, shape index: {2}]
  %5 = xla_tuple %s2, %s3, %s4
  %s6 = sld [smem:[#allocation0]]
  $region42: #{tpu_custom_call.1} parent=0
    _
  %s8 = ssub.s32 1, %s6
  %s9 = scalar_select 0, %s8, %s6
  $region1: #{tpu_custom_call.1} parent=0
    #allocation2 [shape = 'u8[65536]{0}', space=vmem, size = 0x10000, scoped, tag = 'input window, operand 0, single buffered']
    #allocation3 [shape = 's32[1]{0}', space=sflag, size = 0x4, scoped, tag = 'scoped memory for tpu_custom_call.1']
    #allocation4 [shape = 's32[1]{0}', space=sflag, size = 0x4, scoped, tag = 'scoped memory for tpu_custom_call.1']
    #allocation5 [shape = 'u8[65536]{0}', space=vmem, size = 0x10000, scoped, tag = 'input window, operand 1, single buffered']
    #allocation6 [shape = 's32[1]{0}', space=sflag, size = 0x4, scoped, tag = 'scoped memory for tpu_custom_call.1']
    #allocation7 [shape = 'u8[65536]{0}', space=vmem, size = 0x10000, scoped, tag = 'output window, operand 0, single buffered']
    #allocation8 [shape = 'u8[4096]{0}', space=vmem, size = 0x1000, scoped, tag = 'output window, operand 1, single buffered']
    #allocation9 [shape = 's32[1]{0}', space=sflag, size = 0x4, scoped, tag = 'scoped memory for tpu_custom_call.1']
    #allocation10 [shape = 'u8[4096]{0}', space=vmem, size = 0x1000, scoped, tag = 'output window, operand 2, single buffered']
    %10 = vsyncpa [#allocation3], 0
    %11 = vsyncpa [#allocation6], 0
    %12 = vsyncpa [#allocation4], 0
    %13 = vsyncpa [#allocation9], 0
    // Predicated region
    $region2: #{tpu_custom_call.1} parent=1 // pred_check
      _
    $region3: #{tpu_custom_call.1} parent=1 // pred_check_branch
      %15 = sbr.rel (0) target = $region5
    $region4: #{tpu_custom_call.1} parent=1 // pred_region
      %s17 = ssub.s32 2048, 2048
      %18 = vsyncadd [#allocation3], %s17
      %s19 = sshll.u32 [#allocation2], 4
      %s20 = int_to_ptr.vmem [resolvable:$true] %s19
      %25 = dma.hbm_to_vmem [thread:$0]  %s0, 2048, %s20, [#allocation3], 128, 128, 8
    $region5: #{tpu_custom_call.1} parent=1 // pred_fallthru
      _
    // Predicated region
    $region6: #{tpu_custom_call.1} parent=1 // pred_check
      _
    $region7: #{tpu_custom_call.1} parent=1 // pred_check_branch
      %27 = sbr.rel (0) target = $region9
    $region8: #{tpu_custom_call.1} parent=1 // pred_region
      %s29 = ssub.s32 2048, 2048
      %30 = vsyncadd [#allocation6], %s29
      %s31 = sshll.u32 [#allocation5], 4
      %s32 = int_to_ptr.vmem [resolvable:$true] %s31
      %37 = dma.hbm_to_vmem [thread:$0]  %s1, 2048, %s32, [#allocation6], 128, 128, 8
    $region9: #{tpu_custom_call.1} parent=1 // pred_fallthru
      _
    // Predicated region
    $region10: #{tpu_custom_call.1} parent=1 // pred_check
      _
    $region11: #{tpu_custom_call.1} parent=1 // pred_check_branch
      %39 = sbr.rel (0) target = $region13
    $region12: #{tpu_custom_call.1} parent=1 // pred_region
      %40 = dma.done [#allocation3], 2048
    $region13: #{tpu_custom_call.1} parent=1 // pred_fallthru
      _
    // Predicated region
    $region14: #{tpu_custom_call.1} parent=1 // pred_check
      _
    $region15: #{tpu_custom_call.1} parent=1 // pred_check_branch
      %42 = sbr.rel (0) target = $region17
    $region16: #{tpu_custom_call.1} parent=1 // pred_region
      %43 = dma.done [#allocation6], 2048
    $region17: #{tpu_custom_call.1} parent=1 // pred_fallthru
      _
    %v44 = vld [vmem:[#allocation2] sm:$0xff]
    %v45 = vld [vmem:[#allocation2 + $0x8] sm:$0xff]
    %v46 = vld [vmem:[#allocation2 + $0x10] sm:$0xff]
    %v47 = vld [vmem:[#allocation2 + $0x18] sm:$0xff]
    %v48 = vld [vmem:[#allocation2 + $0x20] sm:$0xff]
    %v49 = vld [vmem:[#allocation2 + $0x28] sm:$0xff]
    %v50 = vld [vmem:[#allocation2 + $0x30] sm:$0xff]
    %v51 = vld [vmem:[#allocation2 + $0x38] sm:$0xff]
    %v52 = vld [vmem:[#allocation2 + $0x40] sm:$0xff]
    %v53 = vld [vmem:[#allocation2 + $0x48] sm:$0xff]
    %v54 = vld [vmem:[#allocation2 + $0x50] sm:$0xff]
    %v55 = vld [vmem:[#allocation2 + $0x58] sm:$0xff]
    %v56 = vld [vmem:[#allocation2 + $0x60] sm:$0xff]
    %v57 = vld [vmem:[#allocation2 + $0x68] sm:$0xff]
    %v58 = vld [vmem:[#allocation2 + $0x70] sm:$0xff]
    %v59 = vld [vmem:[#allocation2 + $0x78] sm:$0xff]
    %v60 = vld [vmem:[#allocation5] sm:$0xff]
    %v61 = vld [vmem:[#allocation5 + $0x8] sm:$0xff]
    %v62 = vld [vmem:[#allocation5 + $0x10] sm:$0xff]
    %v63 = vld [vmem:[#allocation5 + $0x18] sm:$0xff]
    %v64 = vld [vmem:[#allocation5 + $0x20] sm:$0xff]
    %v65 = vld [vmem:[#allocation5 + $0x28] sm:$0xff]
    %v66 = vld [vmem:[#allocation5 + $0x30] sm:$0xff]
    %v67 = vld [vmem:[#allocation5 + $0x38] sm:$0xff]
    %v68 = vld [vmem:[#allocation5 + $0x40] sm:$0xff]
    %v69 = vld [vmem:[#allocation5 + $0x48] sm:$0xff]
    %v70 = vld [vmem:[#allocation5 + $0x50] sm:$0xff]
    %v71 = vld [vmem:[#allocation5 + $0x58] sm:$0xff]
    %v72 = vld [vmem:[#allocation5 + $0x60] sm:$0xff]
    %v73 = vld [vmem:[#allocation5 + $0x68] sm:$0xff]
    %v74 = vld [vmem:[#allocation5 + $0x70] sm:$0xff]
    %v75 = vld [vmem:[#allocation5 + $0x78] sm:$0xff]
    %76 = vmatprep.subr.mxu0 0.0
    %77 = vmatpush1.msra.mxu0 %v60
    %78 = vmatprep.subr.mxu0 0.0
    %79 = vmatpush1.msra.mxu0 %v61
    %80 = vmatprep.subr.mxu0 0.0
    %81 = vmatpush1.msra.mxu0 %v62
    %82 = vmatprep.subr.mxu0 0.0
    %83 = vmatpush1.msra.mxu0 %v63
    %84 = vmatprep.subr.mxu0 0.0
    %85 = vmatpush1.msra.mxu0 %v64
    %86 = vmatprep.subr.mxu0 0.0
    %87 = vmatpush1.msra.mxu0 %v65
    %88 = vmatprep.subr.mxu0 0.0
    %89 = vmatpush1.msra.mxu0 %v66
    %90 = vmatprep.subr.mxu0 0.0
    %91 = vmatpush1.msra.mxu0 %v67
    %92 = vmatprep.subr.mxu0 0.0
    %93 = vmatpush1.msra.mxu0 %v68
    %94 = vmatprep.subr.mxu0 0.0
    %95 = vmatpush1.msra.mxu0 %v69
    %96 = vmatprep.subr.mxu0 0.0
    %97 = vmatpush1.msra.mxu0 %v70
    %98 = vmatprep.subr.mxu0 0.0
    %99 = vmatpush1.msra.mxu0 %v71
    %100 = vmatprep.subr.mxu0 0.0
    %101 = vmatpush1.msra.mxu0 %v72
    %102 = vmatprep.subr.mxu0 0.0
    %103 = vmatpush1.msra.mxu0 %v73
    %104 = vmatprep.subr.mxu0 0.0
    %105 = vmatpush1.msra.mxu0 %v74
    %106 = vmatprep.subr.mxu0 0.0
    %107 = vmatpush1.msra.mxu0 %v75
    %108 = vmatprep.subr.mxu0 0.0
    %109 = vmatpush1.msra.mxu0 0.0
    %110 = vmatprep.subr.mxu0 0.0
    %111 = vmatpush1.msra.mxu0 0.0
    %112 = vmatprep.subr.mxu0 0.0
    %113 = vmatpush1.msra.mxu0 0.0
    %114 = vmatprep.subr.mxu0 0.0
    %115 = vmatpush1.msra.mxu0 0.0
    %116 = vmatprep.subr.mxu0 0.0
    %117 = vmatpush1.msra.mxu0 0.0
    %118 = vmatprep.subr.mxu0 0.0
    %119 = vmatpush1.msra.mxu0 0.0
    %120 = vmatprep.subr.mxu0 0.0
    %121 = vmatpush1.msra.mxu0 0.0
    %122 = vmatprep.subr.mxu0 0.0
    %123 = vmatpush1.msra.mxu0 0.0
    %124 = vmatprep.subr.mxu0 0.0
    %125 = vmatpush1.msra.mxu0 0.0
    %126 = vmatprep.subr.mxu0 0.0
    %127 = vmatpush1.msra.mxu0 0.0
    %128 = vmatprep.subr.mxu0 0.0
    %129 = vmatpush1.msra.mxu0 0.0
    %130 = vmatprep.subr.mxu0 0.0
    %131 = vmatpush1.msra.mxu0 0.0
    %132 = vmatprep.subr.mxu0 0.0
    %133 = vmatpush1.msra.mxu0 0.0
    %134 = vmatprep.subr.mxu0 0.0
    %135 = vmatpush1.msra.mxu0 0.0
    %136 = vmatprep.subr.mxu0 0.0
    %137 = vmatpush1.msra.mxu0 0.0
    %138 = vmatprep.subr.mxu0 0.0
    %139 = vmatpush1.msra.mxu0 0.0
    %140 = vmatprep.mubr.f32.mxu0 0.0
    %141 = vmatmul.mubr.f32.gmra.mrb[0].mxu0 %v44
    %v142 = vpop.f32.mrb[0].mxu0
    %v143 = vadd.f32 0.0, %v142
    %v144 = vpop.f32.mrb[0].mxu0
    %145 = vmatprep.mubr.f32.mxu0 0.0
    %146 = vmatmul.mubr.f32.gmra.mrb[0].mxu0 %v45
    %v147 = vpop.f32.mrb[0].mxu0
    %v148 = vadd.f32 0.0, %v147
    %v149 = vpop.f32.mrb[0].mxu0
    %150 = vmatprep.mubr.f32.mxu0 0.0
    %151 = vmatmul.mubr.f32.gmra.mrb[0].mxu0 %v46
    %v152 = vpop.f32.mrb[0].mxu0
    %v153 = vadd.f32 0.0, %v152
    %v154 = vpop.f32.mrb[0].mxu0
    %155 = vmatprep.mubr.f32.mxu0 0.0
    %156 = vmatmul.mubr.f32.gmra.mrb[0].mxu0 %v47
    %v157 = vpop.f32.mrb[0].mxu0
    %v158 = vadd.f32 0.0, %v157
    %v159 = vpop.f32.mrb[0].mxu0
    %160 = vmatprep.mubr.f32.mxu0 0.0
    %161 = vmatmul.mubr.f32.gmra.mrb[0].mxu0 %v48
    %v162 = vpop.f32.mrb[0].mxu0
    %v163 = vadd.f32 0.0, %v162
    %v164 = vpop.f32.mrb[0].mxu0
    %165 = vmatprep.mubr.f32.mxu0 0.0
    %166 = vmatmul.mubr.f32.gmra.mrb[0].mxu0 %v49
    %v167 = vpop.f32.mrb[0].mxu0
    %v168 = vadd.f32 0.0, %v167
    %v169 = vpop.f32.mrb[0].mxu0
    %170 = vmatprep.mubr.f32.mxu0 0.0
    %171 = vmatmul.mubr.f32.gmra.mrb[0].mxu0 %v50
    %v172 = vpop.f32.mrb[0].mxu0
    %v173 = vadd.f32 0.0, %v172
    %v174 = vpop.f32.mrb[0].mxu0
    %175 = vmatprep.mubr.f32.mxu0 0.0
    %176 = vmatmul.mubr.f32.gmra.mrb[0].mxu0 %v51
    %v177 = vpop.f32.mrb[0].mxu0
    %v178 = vadd.f32 0.0, %v177
    %v179 = vpop.f32.mrb[0].mxu0
    %180 = vmatprep.mubr.f32.mxu0 0.0
    %181 = vmatmul.mubr.f32.gmra.mrb[0].mxu0 %v52
    %v182 = vpop.f32.mrb[0].mxu0
    %v183 = vadd.f32 0.0, %v182
    %v184 = vpop.f32.mrb[0].mxu0
    %185 = vmatprep.mubr.f32.mxu0 0.0
    %186 = vmatmul.mubr.f32.gmra.mrb[0].mxu0 %v53
    %v187 = vpop.f32.mrb[0].mxu0
    %v188 = vadd.f32 0.0, %v187
    %v189 = vpop.f32.mrb[0].mxu0
    %190 = vmatprep.mubr.f32.mxu0 0.0
    %191 = vmatmul.mubr.f32.gmra.mrb[0].mxu0 %v54
    %v192 = vpop.f32.mrb[0].mxu0
    %v193 = vadd.f32 0.0, %v192
    %v194 = vpop.f32.mrb[0].mxu0
    %195 = vmatprep.mubr.f32.mxu0 0.0
    %196 = vmatmul.mubr.f32.gmra.mrb[0].mxu0 %v55
    %v197 = vpop.f32.mrb[0].mxu0
    %v198 = vadd.f32 0.0, %v197
    %v199 = vpop.f32.mrb[0].mxu0
    %200 = vmatprep.mubr.f32.mxu0 0.0
    %201 = vmatmul.mubr.f32.gmra.mrb[0].mxu0 %v56
    %v202 = vpop.f32.mrb[0].mxu0
    %v203 = vadd.f32 0.0, %v202
    %v204 = vpop.f32.mrb[0].mxu0
    %205 = vmatprep.mubr.f32.mxu0 0.0
    %206 = vmatmul.mubr.f32.gmra.mrb[0].mxu0 %v57
    %v207 = vpop.f32.mrb[0].mxu0
    %v208 = vadd.f32 0.0, %v207
    %v209 = vpop.f32.mrb[0].mxu0
    %210 = vmatprep.mubr.f32.mxu0 0.0
    %211 = vmatmul.mubr.f32.gmra.mrb[0].mxu0 %v58
    %v212 = vpop.f32.mrb[0].mxu0
    %v213 = vadd.f32 0.0, %v212
    %v214 = vpop.f32.mrb[0].mxu0
    %215 = vmatprep.mubr.f32.mxu0 0.0
    %216 = vmatmul.mubr.f32.gmra.mrb[0].mxu0 %v59
    %v217 = vpop.f32.mrb[0].mxu0
    %v218 = vadd.f32 0.0, %v217
    %v219 = vpop.f32.mrb[0].mxu0
    %220 = vdwg.mxu0
    %221 = vst [vmem:[#allocation7] sm:$0xff] %v143
    %222 = vst [vmem:[#allocation7 + $0x8] sm:$0xff] %v148
    %223 = vst [vmem:[#allocation7 + $0x10] sm:$0xff] %v153
    %224 = vst [vmem:[#allocation7 + $0x18] sm:$0xff] %v158
    %225 = vst [vmem:[#allocation7 + $0x20] sm:$0xff] %v163
    %226 = vst [vmem:[#allocation7 + $0x28] sm:$0xff] %v168
    %227 = vst [vmem:[#allocation7 + $0x30] sm:$0xff] %v173
    %228 = vst [vmem:[#allocation7 + $0x38] sm:$0xff] %v178
    %229 = vst [vmem:[#allocation7 + $0x40] sm:$0xff] %v183
    %230 = vst [vmem:[#allocation7 + $0x48] sm:$0xff] %v188
    %231 = vst [vmem:[#allocation7 + $0x50] sm:$0xff] %v193
    %232 = vst [vmem:[#allocation7 + $0x58] sm:$0xff] %v198
    %233 = vst [vmem:[#allocation7 + $0x60] sm:$0xff] %v203
    %234 = vst [vmem:[#allocation7 + $0x68] sm:$0xff] %v208
    %235 = vst [vmem:[#allocation7 + $0x70] sm:$0xff] %v213
    %236 = vst [vmem:[#allocation7 + $0x78] sm:$0xff] %v218
    %v237 = vadd.f32 %v143, %v148
    %v238 = vadd.f32 %v237, %v153
    %v239 = vadd.f32 %v238, %v158
    %v240 = vadd.f32 %v239, %v163
    %v241 = vadd.f32 %v240, %v168
    %v242 = vadd.f32 %v241, %v173
    %v243 = vadd.f32 %v242, %v178
    %v244 = vadd.f32 %v243, %v183
    %v245 = vadd.f32 %v244, %v188
    %v246 = vadd.f32 %v245, %v193
    %v247 = vadd.f32 %v246, %v198
    %v248 = vadd.f32 %v247, %v203
    %v249 = vadd.f32 %v248, %v208
    %v250 = vadd.f32 %v249, %v213
    %v251 = vadd.f32 %v250, %v218
    %v252 = vrot.slane %v251, 4
    %v253 = vadd.f32 %v251, %v252
    %v254 = vrot.slane %v253, 2
    %v255 = vadd.f32 %v253, %v254
    %v256 = vrot.slane %v255, 1
    %v257 = vadd.f32 %v255, %v256
    %258 = vst [vmem:[#allocation8] sm:$0xff] %v257
    %v259 = vmul.f32 %v143, %v143
    %v260 = vmul.f32 %v148, %v148
    %v261 = vmul.f32 %v153, %v153
    %v262 = vmul.f32 %v158, %v158
    %v263 = vmul.f32 %v163, %v163
    %v264 = vmul.f32 %v168, %v168
    %v265 = vmul.f32 %v173, %v173
    %v266 = vmul.f32 %v178, %v178
    %v267 = vmul.f32 %v183, %v183
    %v268 = vmul.f32 %v188, %v188
    %v269 = vmul.f32 %v193, %v193
    %v270 = vmul.f32 %v198, %v198
    %v271 = vmul.f32 %v203, %v203
    %v272 = vmul.f32 %v208, %v208
    %v273 = vmul.f32 %v213, %v213
    %v274 = vmul.f32 %v218, %v218
    %v275 = vadd.f32 %v259, %v260
    %v276 = vadd.f32 %v275, %v261
    %v277 = vadd.f32 %v276, %v262
    %v278 = vadd.f32 %v277, %v263
    %v279 = vadd.f32 %v278, %v264
    %v280 = vadd.f32 %v279, %v265
    %v281 = vadd.f32 %v280, %v266
    %v282 = vadd.f32 %v281, %v267
    %v283 = vadd.f32 %v282, %v268
    %v284 = vadd.f32 %v283, %v269
    %v285 = vadd.f32 %v284, %v270
    %v286 = vadd.f32 %v285, %v271
    %v287 = vadd.f32 %v286, %v272
    %v288 = vadd.f32 %v287, %v273
    %v289 = vadd.f32 %v288, %v274
    %v290 = vrot.slane %v289, 4
    %v291 = vadd.f32 %v289, %v290
    %v292 = vrot.slane %v291, 2
    %v293 = vadd.f32 %v291, %v292
    %v294 = vrot.slane %v293, 1
    %v295 = vadd.f32 %v293, %v294
    %296 = vst [vmem:[#allocation10] sm:$0xff] %v295
    // Predicated region
    $region18: #{tpu_custom_call.1} parent=1 // pred_check
      _
    $region19: #{tpu_custom_call.1} parent=1 // pred_check_branch
      %298 = sbr.rel (0) target = $region21
    $region20: #{tpu_custom_call.1} parent=1 // pred_region
      %s300 = ssub.s32 2048, 2048
      %301 = vsyncadd [#allocation4], %s300
      %s302 = sshll.u32 [#allocation7], 4
      %s303 = int_to_ptr.vmem [resolvable:$true] %s302
      %308 = dma.vmem_to_hbm [thread:$0]  %s303, 2048, %s2, [#allocation4], 128, 128, 8
    $region21: #{tpu_custom_call.1} parent=1 // pred_fallthru
      _
    // Predicated region
    $region22: #{tpu_custom_call.1} parent=1 // pred_check
      _
    $region23: #{tpu_custom_call.1} parent=1 // pred_check_branch
      %310 = sbr.rel (0) target = $region25
    $region24: #{tpu_custom_call.1} parent=1 // pred_region
      %s312 = ssub.s32 128, 128
      %313 = vsyncadd [#allocation9], %s312
      %s315 = sshll.u32 [#allocation8], 4
      %s316 = int_to_ptr.vmem [resolvable:$true] %s315
      %318 = dma.vmem_to_hbm [thread:$0]  %s316, 128, %s3, [#allocation9]
    $region25: #{tpu_custom_call.1} parent=1 // pred_fallthru
      _
    // Predicated region
    $region26: #{tpu_custom_call.1} parent=1 // pred_check
      _
    $region27: #{tpu_custom_call.1} parent=1 // pred_check_branch
      %320 = sbr.rel (0) target = $region29
    $region28: #{tpu_custom_call.1} parent=1 // pred_region
      %s322 = ssub.s32 128, 128
      %323 = vsyncadd [#allocation9], %s322
      %s325 = sshll.u32 [#allocation10], 4
      %s326 = int_to_ptr.vmem [resolvable:$true] %s325
      %328 = dma.vmem_to_hbm [thread:$0]  %s326, 128, %s4, [#allocation9]
    $region29: #{tpu_custom_call.1} parent=1 // pred_fallthru
      _
    // Predicated region
    $region30: #{tpu_custom_call.1} parent=1 // pred_check
      _
    $region31: #{tpu_custom_call.1} parent=1 // pred_check_branch
      %330 = sbr.rel (0) target = $region33
    $region32: #{tpu_custom_call.1} parent=1 // pred_region
      %331 = dma.done [#allocation4], 2048
    $region33: #{tpu_custom_call.1} parent=1 // pred_fallthru
      _
    // Predicated region
    $region34: #{tpu_custom_call.1} parent=1 // pred_check
      _
    $region35: #{tpu_custom_call.1} parent=1 // pred_check_branch
      %333 = sbr.rel (0) target = $region37
    $region36: #{tpu_custom_call.1} parent=1 // pred_region
      %334 = dma.done [#allocation9], 128
    $region37: #{tpu_custom_call.1} parent=1 // pred_fallthru
      _
    // Predicated region
    $region38: #{tpu_custom_call.1} parent=1 // pred_check
      _
    $region39: #{tpu_custom_call.1} parent=1 // pred_check_branch
      %336 = sbr.rel (0) target = $region41
    $region40: #{tpu_custom_call.1} parent=1 // pred_region
      %337 = dma.done [#allocation9], 128
    $region41: #{tpu_custom_call.1} parent=1 // pred_fallthru
      _
    %338 = vsyncpa [#allocation3], 1
    %339 = vsyncpa [#allocation6], 1
    %340 = vsyncpa [#allocation4], 1
    %341 = vsyncpa [#allocation9], 1

</llo_original>
